<compile_context>
chip_gen: v6e
topology: v6e:2x2x1
jax: 0.10.0
libtpu: 0.0.40
codegen_flags: <defaults>
</compile_context>

<pallas_src>
import functools

import jax
import jax.numpy as jnp
from jax.experimental import pallas as pl
from jax.experimental.pallas import tpu as pltpu


_LANE = 128
_SUBLANE = 8
_MiB = 1024 * 1024


def _round_up(x, m):
    return (x + m - 1) // m * m


def _pick_tk(h_pad, target=512):
    """Largest multiple of 128 <= target that divides h_pad (h_pad % 128 == 0)."""
    for t in range(min(target, h_pad), _LANE - 1, -_LANE):
        if h_pad % t == 0:
            return t
    return _LANE


def _vmem_limit(footprint_bytes):
    """Footprint-derived scoped-VMEM request, capped at 48 MiB (v7x-safe)."""
    return int(min(48 * _MiB, max(footprint_bytes + 8 * _MiB, 16 * _MiB)))


# ----------------------------------------------------------------------------
# Kernel 1: tiled MLM vocab projection.
#   logits = h @ W_v + b_v      (h already masked in the wrapper)
#   grid = (M/tm, V/tn, H/tk); f32 accumulator; bias only at K-finalize;
#   first K step writes the accumulator directly.
# ----------------------------------------------------------------------------
def mlm_logits_kernel(h_ref, wv_ref, bv_ref, o_ref, acc_ref):
    k = pl.program_id(2)
    nk = pl.num_programs(2)

    partial = jnp.dot(h_ref[...], wv_ref[...], preferred_element_type=jnp.float32)

    @pl.when(k == 0)
    def _first():
        acc_ref[...] = partial

    @pl.when(k != 0)
    def _accum():
        acc_ref[...] += partial

    @pl.when(k == nk - 1)
    def _finalize():
        o_ref[...] = (acc_ref[...] + bv_ref[...]).astype(o_ref.dtype)


# ----------------------------------------------------------------------------
# Kernel 2: CLS head on the CLS logit rows (NOT recomputed from W_v).
#   z = cls_logits @ W_l + b_l, reduced over V tiles; log_softmax at finalize
#   over the first `real_l` lanes (rest padded).
# ----------------------------------------------------------------------------
def head_kernel(cls_ref, wl_ref, bl_ref, o_ref, acc_ref, *, real_l):
    j = pl.program_id(0)
    nj = pl.num_programs(0)

    partial = jnp.dot(cls_ref[...], wl_ref[...], preferred_element_type=jnp.float32)

    @pl.when(j == 0)
    def _first():
        acc_ref[...] = partial

    @pl.when(j != 0)
    def _accum():
        acc_ref[...] += partial

    @pl.when(j == nj - 1)
    def _finalize():
        z = acc_ref[...] + bl_ref[...]
        lane = jax.lax.broadcasted_iota(jnp.int32, z.shape, 1)
        z = jnp.where(lane < real_l, z, jnp.float32(-1e30))  # mask padded lanes
        m = jnp.max(z, axis=-1, keepdims=True)
        e = jnp.exp(z - m)
        lse = jnp.log(jnp.sum(e, axis=-1, keepdims=True))
        o_ref[...] = z - m - lse


# ----------------------------------------------------------------------------
# One-time param preparation (outside jit): bf16 cast + tile-friendly padding.
# ----------------------------------------------------------------------------
def prepare_params(raw, *, vocab_size, max_name_length):
    V, L = vocab_size, max_name_length
    emb, wv, bv, wl, bl = raw["emb"], raw["wv"], raw["bv"], raw["wl"], raw["bl"]
    H = emb.shape[1]

    H_pad = _round_up(H, _LANE)
    tn = min(1024, _round_up(V, _LANE))
    V_pad = _round_up(V, tn)
    L_pad = _round_up(L, _LANE)

    emb_p = jnp.zeros((V, H_pad), jnp.bfloat16).at[:, :H].set(emb.astype(jnp.bfloat16))
    wv_p = jnp.zeros((H_pad, V_pad), jnp.bfloat16).at[:H, :V].set(wv.astype(jnp.bfloat16))
    bv_p = jnp.zeros((1, V_pad), jnp.float32).at[:, :V].set(bv.astype(jnp.float32))
    wl_p = jnp.zeros((V_pad, L_pad), jnp.bfloat16).at[:V, :L].set(wl.astype(jnp.bfloat16))
    bl_p = jnp.zeros((1, L_pad), jnp.float32).at[:, :L].set(bl.astype(jnp.float32))

    return {"emb": emb_p, "wv": wv_p, "bv": bv_p, "wl": wl_p, "bl": bl_p}


@functools.partial(jax.jit, static_argnames=("vocab_size", "max_name_length"))
def my_model_forward(code_ids, attention_mask, params, *, vocab_size, max_name_length):
    """Forward pass mirroring myModel.forward.

    Returns (logits, predicted_lengths):
      logits:            (B, S, vocab_size)   float32
      predicted_lengths: (B, max_name_length) float32 (log-probabilities)
    """
    emb, wv, bv, wl, bl = (
        params["emb"], params["wv"], params["bv"], params["wl"], params["bl"]
    )
    B, S = code_ids.shape
    V = vocab_size
    L = max_name_length
    H_pad = emb.shape[1]
    V_pad = wv.shape[1]
    L_pad = wl.shape[1]
    M = B * S

    # ---- glue (plain JAX): embedding gather + attention mask (fused by XLA) --
    mask_bf = attention_mask.astype(jnp.bfloat16)
    h = jnp.take(emb, code_ids, axis=0) * mask_bf[:, :, None]   # (B, S, H_pad) bf16
    h_flat = h.reshape(M, H_pad)

    # ---- tiling / padding ----------------------------------------------------
    tm = min(512, _round_up(M, _SUBLANE))
    M_pad = _round_up(M, tm)
    tn = min(1024, _round_up(V, _LANE))          # V_pad is a multiple of tn by construction
    tk = _pick_tk(H_pad)

    if M_pad > M:
        h_flat = jnp.pad(h_flat, ((0, M_pad - M), (0, 0)))

    grid = (M_pad // tm, V_pad // tn, H_pad // tk)

    # ---- Pallas kernel 1: tiled vocab projection -----------------------------
    k1_footprint = (
        2 * (tm * tk * 2 + tk * tn * 2 + tn * 4)   # double-buffered inputs
        + 2 * (tm * tn * 4)                        # double-buffered output
        + tm * tn * 4                              # accumulator
    )
    logits_full = pl.pallas_call(
        mlm_logits_kernel,
        out_shape=jax.ShapeDtypeStruct((M_pad, V_pad), jnp.float32),
        grid_spec=pltpu.PrefetchScalarGridSpec(
            num_scalar_prefetch=0,
            grid=grid,
            in_specs=[
                pl.BlockSpec((tm, tk), lambda i, j, k: (i, k)),   # h
                pl.BlockSpec((tk, tn), lambda i, j, k: (k, j)),   # W_v
                pl.BlockSpec((1, tn), lambda i, j, k: (0, j)),    # b_v
            ],
            out_specs=pl.BlockSpec((tm, tn), lambda i, j, k: (i, j)),
            scratch_shapes=[pltpu.VMEM((tm, tn), jnp.float32)],
        ),
        compiler_params=pltpu.CompilerParams(
            dimension_semantics=("parallel", "parallel", "arbitrary"),
            vmem_limit_bytes=_vmem_limit(k1_footprint),
        ),
    )(h_flat, wv, bv)

    logits_vpad = logits_full[:M].reshape(B, S, V_pad)
    logits = logits_vpad[:, :, :V]

    # ---- Pallas kernel 2: CLS head fed from kernel 1's CLS rows --------------
    B_pad = _round_up(B, _SUBLANE)
    cls = logits_vpad[:, 0, :].astype(jnp.bfloat16)                # (B, V_pad)
    cls_pad = jnp.zeros((B_pad, V_pad), jnp.bfloat16).at[:B].set(cls)

    tn_h = tn
    k2_footprint = (
        2 * (B_pad * tn_h * 2 + tn_h * L_pad * 2 + L_pad * 4)
        + 2 * (B_pad * L_pad * 4)
        + B_pad * L_pad * 4
    )
    head_out = pl.pallas_call(
        functools.partial(head_kernel, real_l=L),
        out_shape=jax.ShapeDtypeStruct((B_pad, L_pad), jnp.float32),
        grid_spec=pltpu.PrefetchScalarGridSpec(
            num_scalar_prefetch=0,
            grid=(V_pad // tn_h,),
            in_specs=[
                pl.BlockSpec((B_pad, tn_h), lambda j: (0, j)),    # cls logits tile
                pl.BlockSpec((tn_h, L_pad), lambda j: (j, 0)),    # W_l (padded)
                pl.BlockSpec((1, L_pad), lambda j: (0, 0)),       # b_l (padded)
            ],
            out_specs=pl.BlockSpec((B_pad, L_pad), lambda j: (0, 0)),
            scratch_shapes=[pltpu.VMEM((B_pad, L_pad), jnp.float32)],
        ),
        compiler_params=pltpu.CompilerParams(
            dimension_semantics=("arbitrary",),
            vmem_limit_bytes=_vmem_limit(k2_footprint),
        ),
    )(cls_pad, wl, bl)

    predicted_lengths = head_out[:B, :L]
    return logits, predicted_lengths


def init_raw_params(key, vocab_size, hidden, max_name_length):
    k1, k2, k3, k4, k5 = jax.random.split(key, 5)
    scale_h = 1.0 / jnp.sqrt(hidden)
    scale_v = 1.0 / jnp.sqrt(vocab_size)
    return {
        "emb": jax.random.normal(k1, (vocab_size, hidden), jnp.float32) * 0.02,
        "wv": jax.random.normal(k2, (hidden, vocab_size), jnp.float32) * scale_h,
        "bv": jax.random.normal(k3, (1, vocab_size), jnp.float32) * 0.01,
        # nn.Linear(vocab_size, max_name_length): weight (L, V); stored transposed.
        "wl": jax.random.uniform(
            k4, (vocab_size, max_name_length), jnp.float32, -scale_v, scale_v
        ),
        "bl": jax.random.uniform(
            k5, (1, max_name_length), jnp.float32, -scale_v, scale_v
        ),
    }


def _reference(code_ids, attention_mask, raw, vocab_size, max_name_length):
    """Pure-JAX reference using the same bf16 operand quantization."""
    emb, wv, bv, wl, bl = raw["emb"], raw["wv"], raw["bv"], raw["wl"], raw["bl"]
    B, S = code_ids.shape
    H = emb.shape[1]
    h = jnp.take(emb.astype(jnp.bfloat16), code_ids, axis=0)
    m = attention_mask.astype(jnp.bfloat16)[:, :, None]
    a = (h * m).reshape(B * S, H)
    logits = (
        jnp.dot(a, wv.astype(jnp.bfloat16), preferred_element_type=jnp.float32) + bv
    ).reshape(B, S, vocab_size)
    cls = logits[:, 0, :]
    z = (
        jnp.dot(cls.astype(jnp.bfloat16), wl.astype(jnp.bfloat16),
                preferred_element_type=jnp.float32)
        + bl
    )
    return logits, jax.nn.log_softmax(z, axis=-1)


if __name__ == "__main__":
    B, S, H = 2, 8, 32
    VOCAB = 128
    MAX_NAME_LEN = 8

    key = jax.random.PRNGKey(0)
    kp, ki = jax.random.split(key, 2)

    raw_params = init_raw_params(kp, VOCAB, H, MAX_NAME_LEN)
    params = prepare_params(raw_params, vocab_size=VOCAB, max_name_length=MAX_NAME_LEN)

    code_ids = jax.random.randint(ki, (B, S), 0, VOCAB, dtype=jnp.int32)
    attention_mask = jnp.ones((B, S), dtype=jnp.int32).at[:, S - 2:].set(0)

    logits, predicted_lengths = my_model_forward(
        code_ids, attention_mask, params,
        vocab_size=VOCAB, max_name_length=MAX_NAME_LEN,
    )
    jax.block_until_ready((logits, predicted_lengths))

    # shape checks
    assert logits.shape == (B, S, VOCAB)
    assert predicted_lengths.shape == (B, MAX_NAME_LEN)

    # log-softmax rows must sum to ~1 in prob space
    probs_sum = jnp.sum(jnp.exp(predicted_lengths), axis=-1)
    assert bool(jnp.all(jnp.abs(probs_sum - 1.0) < 1e-4))

    # numerical check against a pure-JAX reference with the same bf16 operands
    ref_logits, ref_pred = _reference(
        code_ids, attention_mask, raw_params, VOCAB, MAX_NAME_LEN
    )
    assert bool(jnp.allclose(logits, ref_logits, atol=2e-3, rtol=2e-3))
    assert bool(jnp.allclose(predicted_lengths, ref_pred, atol=2e-3, rtol=2e-3))

    print("KERNEL_OK")
</pallas_src>

<mosaic_0001>
module attributes {stable_mosaic.version = 11 : i64} {
  func.func @mlm_logits_kernel(%arg0: i32, %arg1: i32, %arg2: i32, %arg3: memref<16x128xbf16, #tpu.memory_space<vmem>>, %arg4: memref<128x128xbf16, #tpu.memory_space<vmem>>, %arg5: memref<1x128xf32, #tpu.memory_space<vmem>>, %arg6: memref<16x128xf32, #tpu.memory_space<vmem>>, %arg7: memref<16x128xf32, #tpu.memory_space<vmem>>) attributes {dimension_semantics = [#tpu.dimension_semantics<parallel>, #tpu.dimension_semantics<parallel>, #tpu.dimension_semantics<arbitrary>], iteration_bounds = array<i64: 1, 1, 1>, scalar_prefetch = 0 : i64, scratch_operands = 1 : i64, tpu.core_type = #tpu.core_type<tc>, window_params = [{transform_indices = @transform_0, window_bounds = array<i64: 16, 128>}, {transform_indices = @transform_1, window_bounds = array<i64: 128, 128>}, {transform_indices = @transform_2, window_bounds = array<i64: 1, 128>}, {transform_indices = @transform_3, window_bounds = array<i64: 16, 128>}]} {
    %c0 = arith.constant 0 : index
    %c0_0 = arith.constant 0 : index
    %0 = vector.load %arg3[%c0, %c0_0] : memref<16x128xbf16, #tpu.memory_space<vmem>>, vector<16x128xbf16>
    %c0_1 = arith.constant 0 : index
    %c0_2 = arith.constant 0 : index
    %1 = vector.load %arg4[%c0_1, %c0_2] : memref<128x128xbf16, #tpu.memory_space<vmem>>, vector<128x128xbf16>
    %cst = arith.constant dense<0.000000e+00> : vector<16x128xf32>
    %2 = tpu.matmul %0, %1, %cst {dimension_numbers = #tpu.dot_dimension_numbers<[1], [0], [0], [1], [0, 0, 1, 1], [], []>} : vector<16x128xbf16>, vector<128x128xbf16>, vector<16x128xf32> -> vector<16x128xf32>
    %c0_i32 = arith.constant 0 : i32
    %3 = arith.cmpi eq, %arg2, %c0_i32 : i32
    %4 = arith.extui %3 : i1 to i32
    %c0_i32_3 = arith.constant 0 : i32
    %5 = arith.cmpi ne, %4, %c0_i32_3 : i32
    scf.if %5 {
      %c0_8 = arith.constant 0 : index
      %c0_9 = arith.constant 0 : index
      %12 = vector.load %arg7[%c0_8, %c0_9] : memref<16x128xf32, #tpu.memory_space<vmem>>, vector<16x128xf32>
      tpu.vector_store %arg7[%c0_8, %c0_9], %2 {strides = array<i32>} : memref<16x128xf32, #tpu.memory_space<vmem>>, vector<16x128xf32>,
    } else {
    }
    %c0_i32_4 = arith.constant 0 : i32
    %6 = arith.cmpi ne, %arg2, %c0_i32_4 : i32
    %7 = arith.extui %6 : i1 to i32
    %c0_i32_5 = arith.constant 0 : i32
    %8 = arith.cmpi ne, %7, %c0_i32_5 : i32
    scf.if %8 {
      %c0_8 = arith.constant 0 : index
      %c0_9 = arith.constant 0 : index
      %12 = vector.load %arg7[%c0_8, %c0_9] : memref<16x128xf32, #tpu.memory_space<vmem>>, vector<16x128xf32>
      %13 = arith.addf %12, %2 : vector<16x128xf32>
      %c0_10 = arith.constant 0 : index
      %c0_11 = arith.constant 0 : index
      %14 = vector.load %arg7[%c0_10, %c0_11] : memref<16x128xf32, #tpu.memory_space<vmem>>, vector<16x128xf32>
      tpu.vector_store %arg7[%c0_10, %c0_11], %13 {strides = array<i32>} : memref<16x128xf32, #tpu.memory_space<vmem>>, vector<16x128xf32>,
    } else {
    }
    %c0_i32_6 = arith.constant 0 : i32
    %9 = arith.cmpi eq, %arg2, %c0_i32_6 : i32
    %10 = arith.extui %9 : i1 to i32
    %c0_i32_7 = arith.constant 0 : i32
    %11 = arith.cmpi ne, %10, %c0_i32_7 : i32
    scf.if %11 {
      %c0_8 = arith.constant 0 : index
      %c0_9 = arith.constant 0 : index
      %12 = vector.load %arg7[%c0_8, %c0_9] : memref<16x128xf32, #tpu.memory_space<vmem>>, vector<16x128xf32>
      %c0_10 = arith.constant 0 : index
      %c0_11 = arith.constant 0 : index
      %13 = vector.load %arg5[%c0_10, %c0_11] : memref<1x128xf32, #tpu.memory_space<vmem>>, vector<1x128xf32>
      %14 = vector.broadcast %13 : vector<1x128xf32> to vector<16x128xf32>
      %15 = arith.addf %12, %14 : vector<16x128xf32>
      %c0_12 = arith.constant 0 : index
      %c0_13 = arith.constant 0 : index
      %16 = vector.load %arg6[%c0_12, %c0_13] : memref<16x128xf32, #tpu.memory_space<vmem>>, vector<16x128xf32>
      tpu.vector_store %arg6[%c0_12, %c0_13], %15 {strides = array<i32>} : memref<16x128xf32, #tpu.memory_space<vmem>>, vector<16x128xf32>,
    } else {
    }
    return
  }
  func.func @transform_0(%arg0: i32, %arg1: i32, %arg2: i32) -> (i32, i32) {
    %c0_i32 = arith.constant 0 : i32
    return %arg0, %arg2 : i32, i32
  }
  func.func @transform_1(%arg0: i32, %arg1: i32, %arg2: i32) -> (i32, i32) {
    %c0_i32 = arith.constant 0 : i32
    return %arg2, %arg1 : i32, i32
  }
  func.func @transform_2(%arg0: i32, %arg1: i32, %arg2: i32) -> (i32, i32) {
    %c0_i32 = arith.constant 0 : i32
    %c0_i32_0 = arith.constant 0 : i32
    return %c0_i32, %arg1 : i32, i32
  }
  func.func @transform_3(%arg0: i32, %arg1: i32, %arg2: i32) -> (i32, i32) {
    %c0_i32 = arith.constant 0 : i32
    return %arg0, %arg1 : i32, i32
  }
}

module attributes {stable_mosaic.version = 11 : i64} {
  func.func @head_kernel(%arg0: i32, %arg1: memref<8x128xbf16, #tpu.memory_space<vmem>>, %arg2: memref<128x128xbf16, #tpu.memory_space<vmem>>, %arg3: memref<1x128xf32, #tpu.memory_space<vmem>>, %arg4: memref<8x128xf32, #tpu.memory_space<vmem>>, %arg5: memref<8x128xf32, #tpu.memory_space<vmem>>) attributes {dimension_semantics = [#tpu.dimension_semantics<arbitrary>], iteration_bounds = array<i64: 1>, scalar_prefetch = 0 : i64, scratch_operands = 1 : i64, tpu.core_type = #tpu.core_type<tc>, window_params = [{transform_indices = @transform_0, window_bounds = array<i64: 8, 128>}, {transform_indices = @transform_1, window_bounds = array<i64: 128, 128>}, {pipeline_mode = #tpu.pipeline_mode<synchronous>, transform_indices = @transform_2, window_bounds = array<i64: 1, 128>}, {pipeline_mode = #tpu.pipeline_mode<synchronous>, transform_indices = @transform_3, window_bounds = array<i64: 8, 128>}]} {
    %c0 = arith.constant 0 : index
    %c0_0 = arith.constant 0 : index
    %0 = vector.load %arg1[%c0, %c0_0] : memref<8x128xbf16, #tpu.memory_space<vmem>>, vector<8x128xbf16>
    %c0_1 = arith.constant 0 : index
    %c0_2 = arith.constant 0 : index
    %1 = vector.load %arg2[%c0_1, %c0_2] : memref<128x128xbf16, #tpu.memory_space<vmem>>, vector<128x128xbf16>
    %cst = arith.constant dense<0.000000e+00> : vector<8x128xf32>
    %2 = tpu.matmul %0, %1, %cst {dimension_numbers = #tpu.dot_dimension_numbers<[1], [0], [0], [1], [0, 0, 1, 1], [], []>} : vector<8x128xbf16>, vector<128x128xbf16>, vector<8x128xf32> -> vector<8x128xf32>
    %c0_i32 = arith.constant 0 : i32
    %3 = arith.cmpi eq, %arg0, %c0_i32 : i32
    %4 = arith.extui %3 : i1 to i32
    %c0_i32_3 = arith.constant 0 : i32
    %5 = arith.cmpi ne, %4, %c0_i32_3 : i32
    scf.if %5 {
      %c0_8 = arith.constant 0 : index
      %c0_9 = arith.constant 0 : index
      %12 = vector.load %arg5[%c0_8, %c0_9] : memref<8x128xf32, #tpu.memory_space<vmem>>, vector<8x128xf32>
      tpu.vector_store %arg5[%c0_8, %c0_9], %2 {strides = array<i32>} : memref<8x128xf32, #tpu.memory_space<vmem>>, vector<8x128xf32>,
    } else {
    }
    %c0_i32_4 = arith.constant 0 : i32
    %6 = arith.cmpi ne, %arg0, %c0_i32_4 : i32
    %7 = arith.extui %6 : i1 to i32
    %c0_i32_5 = arith.constant 0 : i32
    %8 = arith.cmpi ne, %7, %c0_i32_5 : i32
    scf.if %8 {
      %c0_8 = arith.constant 0 : index
      %c0_9 = arith.constant 0 : index
      %12 = vector.load %arg5[%c0_8, %c0_9] : memref<8x128xf32, #tpu.memory_space<vmem>>, vector<8x128xf32>
      %13 = arith.addf %12, %2 : vector<8x128xf32>
      %c0_10 = arith.constant 0 : index
      %c0_11 = arith.constant 0 : index
      %14 = vector.load %arg5[%c0_10, %c0_11] : memref<8x128xf32, #tpu.memory_space<vmem>>, vector<8x128xf32>
      tpu.vector_store %arg5[%c0_10, %c0_11], %13 {strides = array<i32>} : memref<8x128xf32, #tpu.memory_space<vmem>>, vector<8x128xf32>,
    } else {
    }
    %c0_i32_6 = arith.constant 0 : i32
    %9 = arith.cmpi eq, %arg0, %c0_i32_6 : i32
    %10 = arith.extui %9 : i1 to i32
    %c0_i32_7 = arith.constant 0 : i32
    %11 = arith.cmpi ne, %10, %c0_i32_7 : i32
    scf.if %11 {
      %c0_8 = arith.constant 0 : index
      %c0_9 = arith.constant 0 : index
      %12 = vector.load %arg5[%c0_8, %c0_9] : memref<8x128xf32, #tpu.memory_space<vmem>>, vector<8x128xf32>
      %c0_10 = arith.constant 0 : index
      %c0_11 = arith.constant 0 : index
      %13 = vector.load %arg3[%c0_10, %c0_11] : memref<1x128xf32, #tpu.memory_space<vmem>>, vector<1x128xf32>
      %14 = vector.broadcast %13 : vector<1x128xf32> to vector<8x128xf32>
      %15 = arith.addf %12, %14 : vector<8x128xf32>
      %16 = tpu.iota {dimensions = array<i32: 1>} : vector<8x128xi32>
      %c8_i32 = arith.constant 8 : i32
      %17 = vector.broadcast %c8_i32 : i32 to vector<8x128xi32>
      %18 = arith.cmpi slt, %16, %17 : vector<8x128xi32>
      %cst_12 = arith.constant -1.000000e+30 : f32
      %19 = vector.broadcast %cst_12 : f32 to vector<8x128xf32>
      %20 = arith.select %18, %15, %19 : vector<8x128xi1>, vector<8x128xf32>
      %cst_13 = arith.constant dense<0xFF800000> : vector<8xf32>
      %21 = vector.multi_reduction <maximumf>, %20, %cst_13 [1] : vector<8x128xf32> to vector<8xf32>
      %22 = vector.shape_cast %21 : vector<8xf32> to vector<8x1xf32>
      %23 = vector.broadcast %22 : vector<8x1xf32> to vector<8x128xf32>
      %24 = arith.subf %20, %23 : vector<8x128xf32>
      %25 = math.exp %24 : vector<8x128xf32>
      %cst_14 = arith.constant dense<0.000000e+00> : vector<8xf32>
      %26 = vector.multi_reduction <add>, %25, %cst_14 [1] : vector<8x128xf32> to vector<8xf32>
      %27 = vector.shape_cast %26 : vector<8xf32> to vector<8x1xf32>
      %28 = math.log %27 : vector<8x1xf32>
      %29 = vector.broadcast %22 : vector<8x1xf32> to vector<8x128xf32>
      %30 = arith.subf %20, %29 : vector<8x128xf32>
      %31 = vector.broadcast %28 : vector<8x1xf32> to vector<8x128xf32>
      %32 = arith.subf %30, %31 : vector<8x128xf32>
      %c0_15 = arith.constant 0 : index
      %c0_16 = arith.constant 0 : index
      %33 = vector.load %arg4[%c0_15, %c0_16] : memref<8x128xf32, #tpu.memory_space<vmem>>, vector<8x128xf32>
      tpu.vector_store %arg4[%c0_15, %c0_16], %32 {strides = array<i32>} : memref<8x128xf32, #tpu.memory_space<vmem>>, vector<8x128xf32>,
    } else {
    }
    return
  }
  func.func @transform_0(%arg0: i32) -> (i32, i32) {
    %c0_i32 = arith.constant 0 : i32
    %c0_i32_0 = arith.constant 0 : i32
    return %c0_i32, %arg0 : i32, i32
  }
  func.func @transform_1(%arg0: i32) -> (i32, i32) {
    %c0_i32 = arith.constant 0 : i32
    %c0_i32_0 = arith.constant 0 : i32
    return %arg0, %c0_i32 : i32, i32
  }
  func.func @transform_2(%arg0: i32) -> (i32, i32) {
    %c0_i32 = arith.constant 0 : i32
    %c0_i32_0 = arith.constant 0 : i32
    %c0_i32_1 = arith.constant 0 : i32
    return %c0_i32, %c0_i32_0 : i32, i32
  }
  func.func @transform_3(%arg0: i32) -> (i32, i32) {
    %c0_i32 = arith.constant 0 : i32
    %c0_i32_0 = arith.constant 0 : i32
    %c0_i32_1 = arith.constant 0 : i32
    return %c0_i32, %c0_i32_0 : i32, i32
  }
}

</mosaic_0001>

<llo_original>
// kernel: my_model_forward.3
$region0: #{my_model_forward.3}
  #allocation0 [shape = 'u32[]', space=smem, size = 0x4, offset = 0x4, fixed_abs, tag = 'smem constant byte address 0x4 - core index']
  #allocation1 [shape = 'u32[144,128]{1,0:T(1,128)}', space=vmem, size = 0x12000, scoped, tag = 'internal scratch']
  #allocation2 [shape = 'f32[8,128]{1,0:T(8,128)}', space=vmem, size = 0x1000, scoped, tag = 'scratch operand']
  %s0 = inlined_call_operand.vmem [shape: bf16[8,128], index: 0, kind: input, shape index: {}]
  %s1 = inlined_call_operand.vmem [shape: bf16[128,128], index: 1, kind: input, shape index: {}]
  %s2 = inlined_call_operand.vmem [shape: f32[1,128], index: 2, kind: input, shape index: {}]
  %s3 = inlined_call_operand.vmem [shape: f32[8,128], index: 3, kind: output, shape index: {}]
  %s4 = sld [smem:[#allocation0]]
  $region34: #{my_model_forward.3} parent=0
    _
  %s6 = ssub.s32 1, %s4
  %s7 = scalar_select 0, %s6, %s4
  // Predicated region
  $region2: #{my_model_forward.3} parent=0 // pred_check
    _
  $region3: #{my_model_forward.3} parent=0 // pred_check_branch
    %9 = sbr.rel (0) target = $region5
  $region4: #{my_model_forward.3} parent=0 // pred_region
    _
  $region5: #{my_model_forward.3} parent=0 // pred_fallthru
    _
  // Predicated region
  $region6: #{my_model_forward.3} parent=0 // pred_check
    _
  $region7: #{my_model_forward.3} parent=0 // pred_check_branch
    %11 = sbr.rel (0) target = $region9
  $region8: #{my_model_forward.3} parent=0 // pred_region
    _
  $region9: #{my_model_forward.3} parent=0 // pred_fallthru
    _
  // Predicated region
  $region10: #{my_model_forward.3} parent=0 // pred_check
    _
  $region11: #{my_model_forward.3} parent=0 // pred_check_branch
    %13 = sbr.rel (0) target = $region13
  $region12: #{my_model_forward.3} parent=0 // pred_region
    _
  $region13: #{my_model_forward.3} parent=0 // pred_fallthru
    _
  %v15 = vld [vmem:[%s0] sm:$0xf]
  %v16 = vld [vmem:[%s1] sm:$0xf]
  %v17 = vld [vmem:[%s1 + $0x4] sm:$0xf]
  %v18 = vld [vmem:[%s1 + $0x8] sm:$0xf]
  %v19 = vld [vmem:[%s1 + $0xc] sm:$0xf]
  %v20 = vld [vmem:[%s1 + $0x10] sm:$0xf]
  %v21 = vld [vmem:[%s1 + $0x14] sm:$0xf]
  %v22 = vld [vmem:[%s1 + $0x18] sm:$0xf]
  %v23 = vld [vmem:[%s1 + $0x1c] sm:$0xf]
  %v24 = vld [vmem:[%s1 + $0x20] sm:$0xf]
  %v25 = vld [vmem:[%s1 + $0x24] sm:$0xf]
  %v26 = vld [vmem:[%s1 + $0x28] sm:$0xf]
  %v27 = vld [vmem:[%s1 + $0x2c] sm:$0xf]
  %v28 = vld [vmem:[%s1 + $0x30] sm:$0xf]
  %v29 = vld [vmem:[%s1 + $0x34] sm:$0xf]
  %v30 = vld [vmem:[%s1 + $0x38] sm:$0xf]
  %v31 = vld [vmem:[%s1 + $0x3c] sm:$0xf]
  %v48 = vunpack.c.l.b16 %v16
  %v49 = vunpack.c.l.b16 %v17
  %v50 = vunpack.c.l.b16 %v18
  %v51 = vunpack.c.l.b16 %v19
  %v52 = vunpack.c.l.b16 %v20
  %v53 = vunpack.c.l.b16 %v21
  %v54 = vunpack.c.l.b16 %v22
  %v55 = vunpack.c.l.b16 %v23
  %v56 = vunpack.c.l.b16 %v24
  %v57 = vunpack.c.l.b16 %v25
  %v58 = vunpack.c.l.b16 %v26
  %v59 = vunpack.c.l.b16 %v27
  %v60 = vunpack.c.l.b16 %v28
  %v61 = vunpack.c.l.b16 %v29
  %v62 = vunpack.c.l.b16 %v30
  %v63 = vunpack.c.l.b16 %v31
  %v64 = vpack.c.b16 %v49, %v48
  %v65 = vpack.c.b16 %v51, %v50
  %v66 = vpack.c.b16 %v53, %v52
  %v67 = vpack.c.b16 %v55, %v54
  %v68 = vpack.c.b16 %v57, %v56
  %v69 = vpack.c.b16 %v59, %v58
  %v70 = vpack.c.b16 %v61, %v60
  %v71 = vpack.c.b16 %v63, %v62
  %80 = vmatprep.subr.bf16.mxu0 0
  %81 = vmatpush1.bf16.msra.mxu0 %v71
  %82 = vmatprep.subr.bf16.mxu0 0
  %83 = vmatpush1.bf16.msra.mxu0 %v70
  %84 = vmatprep.subr.bf16.mxu0 0
  %85 = vmatpush1.bf16.msra.mxu0 %v69
  %86 = vmatprep.subr.bf16.mxu0 0
  %87 = vmatpush1.bf16.msra.mxu0 %v68
  %88 = vmatprep.subr.bf16.mxu0 0
  %89 = vmatpush1.bf16.msra.mxu0 %v67
  %90 = vmatprep.subr.bf16.mxu0 0
  %91 = vmatpush1.bf16.msra.mxu0 %v66
  %92 = vmatprep.subr.bf16.mxu0 0
  %93 = vmatpush1.bf16.msra.mxu0 %v65
  %94 = vmatprep.subr.bf16.mxu0 0
  %95 = vmatpush1.bf16.msra.mxu0 %v64
  %96 = vmatprep.subr.bf16.mxu0 0
  %97 = vmatpush2.bf16.msra.mxu0 0
  %98 = vmatprep.subr.bf16.mxu0 0
  %99 = vmatpush2.bf16.msra.mxu0 0
  %100 = vmatprep.subr.bf16.mxu0 0
  %101 = vmatpush2.bf16.msra.mxu0 0
  %102 = vmatprep.subr.bf16.mxu0 0
  %103 = vmatpush2.bf16.msra.mxu0 0
  %104 = vmatprep.subr.bf16.mxu0 0
  %105 = vmatpush2.bf16.msra.mxu0 0
  %106 = vmatprep.subr.bf16.mxu0 0
  %107 = vmatpush2.bf16.msra.mxu0 0
  %108 = vmatprep.subr.bf16.mxu0 0
  %109 = vmatpush2.bf16.msra.mxu0 0
  %110 = vmatprep.subr.bf16.mxu0 0
  %111 = vmatpush2.bf16.msra.mxu0 0
  %112 = vmatprep.mubr.bf16.mxu0 0
  %113 = vmatmul.mubr.bf16.gmra.mxu0 %v15
  %v114 = vpop.f32.mrf.mxu0
  %v115 = vadd.f32 0.0, %v114
  %v116 = vpop.f32.mrf.mxu0
  %v117 = vpop.f32.mrf.mxu0
  %v118 = vpop.f32.mrf.mxu0
  %119 = vdwg.mxu0
  %p120 = scmp.eq.s32.totalorder 0, 0
  // Predicated region
  $region14: #{my_model_forward.3} parent=0 // pred_check
    %p121 = pneg %p120
  $region15: #{my_model_forward.3} parent=0 // pred_check_branch
    %123 = sbr.rel (%p121) target = $region17
  $region16: #{my_model_forward.3} parent=0 // pred_region
    %124 = vst [vmem:[#allocation2] sm:$0xff] %v115
  $region17: #{my_model_forward.3} parent=0 // pred_fallthru
    _
  %p125 = scmp.ne.s32.totalorder 0, 0
  // Predicated region
  $region18: #{my_model_forward.3} parent=0 // pred_check
    %p126 = pneg %p125
  $region19: #{my_model_forward.3} parent=0 // pred_check_branch
    %128 = sbr.rel (%p126) target = $region21
  $region20: #{my_model_forward.3} parent=0 // pred_region
    %v129 = vld [vmem:[#allocation2] sm:$0xff]
    %v130 = vadd.f32 %v129, %v115
    %131 = vst [vmem:[#allocation2] sm:$0xff] %v130
  $region21: #{my_model_forward.3} parent=0 // pred_fallthru
    _
  // Predicated region
  $region22: #{my_model_forward.3} parent=0 // pred_check
    %p132 = pneg %p120
  $region23: #{my_model_forward.3} parent=0 // pred_check_branch
    %134 = sbr.rel (%p132) target = $region25
  $region24: #{my_model_forward.3} parent=0 // pred_region
    %v135 = vld [vmem:[#allocation2] sm:$0xff]
    %v136 = vld [vmem:[%s2] sm:$0x1]
    %v138 = vlaneseq
    %v139 = vshrl.u32 %v138, 7
    %v140 = vsub.s32 0, %v139
    %v141 = vrot.slane %v136, %v140
    %v143 = vadd.f32 %v135, %v141
    %v144 = vlaneseq
    %v145 = vand.u32 %v144, 127
    %vm146 = vcmp.lt.s32.totalorder %v145, 8
    %v147 = vsel %vm146, %v143, -1e+30
    %148 = vmax.xlane.f32.xlu0 %v147
    %v149 = vpop.xlane.xlu0 %148
    %v150 = vsub.f32 %v147, %v149
    %v151 = vmul.f32 %v150, 1.442695
    %v152 = vpow.pop %v151
    %153 = vadd.xlane.f32.xlu0 %v152
    %v154 = vpop.xlane.xlu0 %153
    %v155 = vlog2.pop %v154
    %v156 = vmul.f32 %v155, 0.6931472
    %v157 = vsub.f32 %v150, %v156
    %158 = vst [vmem:[%s3] sm:$0xff] %v157
  $region25: #{my_model_forward.3} parent=0 // pred_fallthru
    _
  // Predicated region
  $region26: #{my_model_forward.3} parent=0 // pred_check
    _
  $region27: #{my_model_forward.3} parent=0 // pred_check_branch
    %160 = sbr.rel (0) target = $region29
  $region28: #{my_model_forward.3} parent=0 // pred_region
    _
  $region29: #{my_model_forward.3} parent=0 // pred_fallthru
    _
  // Predicated region
  $region30: #{my_model_forward.3} parent=0 // pred_check
    _
  $region31: #{my_model_forward.3} parent=0 // pred_check_branch
    %162 = sbr.rel (0) target = $region33
  $region32: #{my_model_forward.3} parent=0 // pred_region
    _
  $region33: #{my_model_forward.3} parent=0 // pred_fallthru
    _

// kernel: my_model_forward.2
$region0: #{my_model_forward.2}
  #allocation0 [shape = 'u32[]', space=smem, size = 0x4, offset = 0x4, fixed_abs, tag = 'smem constant byte address 0x4 - core index']
  #allocation1 [shape = 'u32[144,128]{1,0:T(1,128)}', space=vmem, size = 0x12000, scoped, tag = 'internal scratch']
  #allocation2 [shape = 'f32[16,128]{1,0:T(8,128)}', space=vmem, size = 0x2000, scoped, tag = 'scratch operand']
  %s0 = inlined_call_operand.vmem [shape: bf16[16,128], index: 0, kind: input, shape index: {}]
  %s1 = inlined_call_operand.vmem [shape: bf16[128,128], index: 1, kind: input, shape index: {}]
  %s2 = inlined_call_operand.vmem [shape: f32[1,128], index: 2, kind: input, shape index: {}]
  %s3 = inlined_call_operand.vmem [shape: f32[16,128], index: 3, kind: output, shape index: {}]
  %s4 = sld [smem:[#allocation0]]
  $region34: #{my_model_forward.2} parent=0
    _
  %s6 = ssub.s32 1, %s4
  %s7 = scalar_select 0, %s6, %s4
  // Predicated region
  $region2: #{my_model_forward.2} parent=0 // pred_check
    _
  $region3: #{my_model_forward.2} parent=0 // pred_check_branch
    %9 = sbr.rel (0) target = $region5
  $region4: #{my_model_forward.2} parent=0 // pred_region
    _
  $region5: #{my_model_forward.2} parent=0 // pred_fallthru
    _
  // Predicated region
  $region6: #{my_model_forward.2} parent=0 // pred_check
    _
  $region7: #{my_model_forward.2} parent=0 // pred_check_branch
    %11 = sbr.rel (0) target = $region9
  $region8: #{my_model_forward.2} parent=0 // pred_region
    _
  $region9: #{my_model_forward.2} parent=0 // pred_fallthru
    _
  // Predicated region
  $region10: #{my_model_forward.2} parent=0 // pred_check
    _
  $region11: #{my_model_forward.2} parent=0 // pred_check_branch
    %13 = sbr.rel (0) target = $region13
  $region12: #{my_model_forward.2} parent=0 // pred_region
    _
  $region13: #{my_model_forward.2} parent=0 // pred_fallthru
    _
  %v15 = vld [vmem:[%s0] sm:$0xf]
  %v16 = vld [vmem:[%s0 + $0x4] sm:$0xf]
  %v17 = vld [vmem:[%s1] sm:$0xf]
  %v18 = vld [vmem:[%s1 + $0x4] sm:$0xf]
  %v19 = vld [vmem:[%s1 + $0x8] sm:$0xf]
  %v20 = vld [vmem:[%s1 + $0xc] sm:$0xf]
  %v21 = vld [vmem:[%s1 + $0x10] sm:$0xf]
  %v22 = vld [vmem:[%s1 + $0x14] sm:$0xf]
  %v23 = vld [vmem:[%s1 + $0x18] sm:$0xf]
  %v24 = vld [vmem:[%s1 + $0x1c] sm:$0xf]
  %v25 = vld [vmem:[%s1 + $0x20] sm:$0xf]
  %v26 = vld [vmem:[%s1 + $0x24] sm:$0xf]
  %v27 = vld [vmem:[%s1 + $0x28] sm:$0xf]
  %v28 = vld [vmem:[%s1 + $0x2c] sm:$0xf]
  %v29 = vld [vmem:[%s1 + $0x30] sm:$0xf]
  %v30 = vld [vmem:[%s1 + $0x34] sm:$0xf]
  %v31 = vld [vmem:[%s1 + $0x38] sm:$0xf]
  %v32 = vld [vmem:[%s1 + $0x3c] sm:$0xf]
  %v35 = vunpack.c.l.b16 %v15
  %v36 = vunpack.c.l.b16 %v16
  %v37 = vpack.c.b16 %v36, %v35
  %v55 = vunpack.c.l.b16 %v17
  %v56 = vunpack.c.l.b16 %v18
  %v57 = vunpack.c.l.b16 %v19
  %v58 = vunpack.c.l.b16 %v20
  %v59 = vunpack.c.l.b16 %v21
  %v60 = vunpack.c.l.b16 %v22
  %v61 = vunpack.c.l.b16 %v23
  %v62 = vunpack.c.l.b16 %v24
  %v63 = vunpack.c.l.b16 %v25
  %v64 = vunpack.c.l.b16 %v26
  %v65 = vunpack.c.l.b16 %v27
  %v66 = vunpack.c.l.b16 %v28
  %v67 = vunpack.c.l.b16 %v29
  %v68 = vunpack.c.l.b16 %v30
  %v69 = vunpack.c.l.b16 %v31
  %v70 = vunpack.c.l.b16 %v32
  %v71 = vpack.c.b16 %v56, %v55
  %v72 = vpack.c.b16 %v58, %v57
  %v73 = vpack.c.b16 %v60, %v59
  %v74 = vpack.c.b16 %v62, %v61
  %v75 = vpack.c.b16 %v64, %v63
  %v76 = vpack.c.b16 %v66, %v65
  %v77 = vpack.c.b16 %v68, %v67
  %v78 = vpack.c.b16 %v70, %v69
  %87 = vmatprep.subr.bf16.mxu0 0
  %88 = vmatpush1.bf16.msra.mxu0 %v78
  %89 = vmatprep.subr.bf16.mxu0 0
  %90 = vmatpush1.bf16.msra.mxu0 %v77
  %91 = vmatprep.subr.bf16.mxu0 0
  %92 = vmatpush1.bf16.msra.mxu0 %v76
  %93 = vmatprep.subr.bf16.mxu0 0
  %94 = vmatpush1.bf16.msra.mxu0 %v75
  %95 = vmatprep.subr.bf16.mxu0 0
  %96 = vmatpush1.bf16.msra.mxu0 %v74
  %97 = vmatprep.subr.bf16.mxu0 0
  %98 = vmatpush1.bf16.msra.mxu0 %v73
  %99 = vmatprep.subr.bf16.mxu0 0
  %100 = vmatpush1.bf16.msra.mxu0 %v72
  %101 = vmatprep.subr.bf16.mxu0 0
  %102 = vmatpush1.bf16.msra.mxu0 %v71
  %103 = vmatprep.subr.bf16.mxu0 0
  %104 = vmatpush2.bf16.msra.mxu0 0
  %105 = vmatprep.subr.bf16.mxu0 0
  %106 = vmatpush2.bf16.msra.mxu0 0
  %107 = vmatprep.subr.bf16.mxu0 0
  %108 = vmatpush2.bf16.msra.mxu0 0
  %109 = vmatprep.subr.bf16.mxu0 0
  %110 = vmatpush2.bf16.msra.mxu0 0
  %111 = vmatprep.subr.bf16.mxu0 0
  %112 = vmatpush2.bf16.msra.mxu0 0
  %113 = vmatprep.subr.bf16.mxu0 0
  %114 = vmatpush2.bf16.msra.mxu0 0
  %115 = vmatprep.subr.bf16.mxu0 0
  %116 = vmatpush2.bf16.msra.mxu0 0
  %117 = vmatprep.subr.bf16.mxu0 0
  %118 = vmatpush2.bf16.msra.mxu0 0
  %119 = vmatprep.mubr.bf16.mxu0 0
  %120 = vmatmul.mubr.bf16.gmra.mxu0 %v37
  %v121 = vpop.f32.mrf.mxu0
  %v122 = vadd.f32 0.0, %v121
  %v123 = vpop.f32.mrf.mxu0
  %v124 = vpop.f32.mrf.mxu0
  %v125 = vadd.f32 0.0, %v124
  %v126 = vpop.f32.mrf.mxu0
  %127 = vdwg.mxu0
  %p128 = scmp.eq.s32.totalorder 0, 0
  // Predicated region
  $region14: #{my_model_forward.2} parent=0 // pred_check
    %p129 = pneg %p128
  $region15: #{my_model_forward.2} parent=0 // pred_check_branch
    %131 = sbr.rel (%p129) target = $region17
  $region16: #{my_model_forward.2} parent=0 // pred_region
    %132 = vst [vmem:[#allocation2] sm:$0xff] %v122
    %133 = vst [vmem:[#allocation2 + $0x8] sm:$0xff] %v125
  $region17: #{my_model_forward.2} parent=0 // pred_fallthru
    _
  %p134 = scmp.ne.s32.totalorder 0, 0
  // Predicated region
  $region18: #{my_model_forward.2} parent=0 // pred_check
    %p135 = pneg %p134
  $region19: #{my_model_forward.2} parent=0 // pred_check_branch
    %137 = sbr.rel (%p135) target = $region21
  $region20: #{my_model_forward.2} parent=0 // pred_region
    %v138 = vld [vmem:[#allocation2] sm:$0xff]
    %v139 = vld [vmem:[#allocation2 + $0x8] sm:$0xff]
    %v140 = vadd.f32 %v138, %v122
    %v141 = vadd.f32 %v139, %v125
    %142 = vst [vmem:[#allocation2] sm:$0xff] %v140
    %143 = vst [vmem:[#allocation2 + $0x8] sm:$0xff] %v141
  $region21: #{my_model_forward.2} parent=0 // pred_fallthru
    _
  // Predicated region
  $region22: #{my_model_forward.2} parent=0 // pred_check
    %p144 = pneg %p128
  $region23: #{my_model_forward.2} parent=0 // pred_check_branch
    %146 = sbr.rel (%p144) target = $region25
  $region24: #{my_model_forward.2} parent=0 // pred_region
    %v147 = vld [vmem:[#allocation2] sm:$0xff]
    %v148 = vld [vmem:[#allocation2 + $0x8] sm:$0xff]
    %v149 = vld [vmem:[%s2] sm:$0x1]
    %v151 = vlaneseq
    %v152 = vshrl.u32 %v151, 7
    %v153 = vsub.s32 0, %v152
    %v154 = vrot.slane %v149, %v153
    %v156 = vadd.f32 %v147, %v154
    %v157 = vadd.f32 %v148, %v154
    %158 = vst [vmem:[%s3] sm:$0xff] %v156
    %159 = vst [vmem:[%s3 + $0x8] sm:$0xff] %v157
  $region25: #{my_model_forward.2} parent=0 // pred_fallthru
    _
  // Predicated region
  $region26: #{my_model_forward.2} parent=0 // pred_check
    _
  $region27: #{my_model_forward.2} parent=0 // pred_check_branch
    %161 = sbr.rel (0) target = $region29
  $region28: #{my_model_forward.2} parent=0 // pred_region
    _
  $region29: #{my_model_forward.2} parent=0 // pred_fallthru
    _
  // Predicated region
  $region30: #{my_model_forward.2} parent=0 // pred_check
    _
  $region31: #{my_model_forward.2} parent=0 // pred_check_branch
    %163 = sbr.rel (0) target = $region33
  $region32: #{my_model_forward.2} parent=0 // pred_region
    _
  $region33: #{my_model_forward.2} parent=0 // pred_fallthru
    _

</llo_original>
